<compile_context>
chip_gen: v6e
topology: v6e:2x2x1
jax: 0.10.0
libtpu: 0.0.40
codegen_flags: <defaults>
</compile_context>

<pallas_src>
import jax
import jax.numpy as jnp
from jax.experimental import pallas as pl
from jax.experimental.pallas import tpu as pltpu


def _round_up(x, m):
    return (x + m - 1) // m * m


def _critic_kernel(x_ref, w1_ref, b1_ref,
                   w2a_ref, b2a_ref, w2b_ref, b2b_ref,
                   w3a_ref, w3b_ref, b3_ref,
                   out_ref):
    """One batch-tile of the fused twin-Q MLP.

    x_ref:   (TB, S+A) f32   pre-packed [state | action]
    w1_ref:  (S+A, 2H) bf16  [q1.w1 | q2.w1]            b1_ref:  (1, 2H) f32
    w2a/w2b: (H, H)    bf16  per-head layer 2           b2a/b2b: (1, H)  f32
    w3a/w3b: (H, 2)    bf16  zero-padded so that
             h2a @ w3a + h2b @ w3b == [q1 | q2]         b3_ref:  (1, 2)  f32
    out_ref: (TB, 2)   f32   column 0 = q1, column 1 = q2
    """
    H = w2a_ref.shape[0]

    x = x_ref[...].astype(jnp.bfloat16)

    # Layer 1: single (TB, S+A) x (S+A, 2H) MXU pass for BOTH heads.
    h1 = jnp.dot(x, w1_ref[...], preferred_element_type=jnp.float32) + b1_ref[...]
    h1 = jnp.maximum(h1, 0.0)

    # Per-head split.  Free views when H % 128 == 0 (production sizes).
    h1a = h1[:, :H].astype(jnp.bfloat16)
    h1b = h1[:, H:].astype(jnp.bfloat16)

    # Layer 2 (per head, H x H) on the MXU; bias + ReLU epilogue in f32 (VPU).
    h2a = jnp.maximum(
        jnp.dot(h1a, w2a_ref[...], preferred_element_type=jnp.float32)
        + b2a_ref[...], 0.0)
    h2b = jnp.maximum(
        jnp.dot(h1b, w2b_ref[...], preferred_element_type=jnp.float32)
        + b2b_ref[...], 0.0)

    # Layer 3 (H -> 1 per head) as two narrow MXU dots against zero-padded
    # (H, 2) weights: avoids per-row XLU cross-lane reduces (vext-slot
    # pressure) and yields the (TB, 2) output slab directly, so the epilogue
    # is one merged store instead of two lane-sparse column writes.
    q = (jnp.dot(h2a.astype(jnp.bfloat16), w3a_ref[...],
                 preferred_element_type=jnp.float32)
         + jnp.dot(h2b.astype(jnp.bfloat16), w3b_ref[...],
                   preferred_element_type=jnp.float32)
         + b3_ref[...])
    out_ref[...] = q


def critic_forward(state, action, params, *, batch_tile=None,
                   single_buffer_weights=None):
    """Pallas implementation of Critic.forward(state, action) -> (q1, q2)."""
    state = state.astype(jnp.float32)
    action = action.astype(jnp.float32)
    B = state.shape[0]
    in_dim = state.shape[1] + action.shape[1]
    H = params["q1"]["w2"].shape[0]

    # Pre-packed [state | action] so layer 1 is a single MXU dot.
    x = jnp.concatenate([state, action], axis=-1)

    # Batch tile: multiple of 8 sublanes.  Default aims for
    #  * >= 2 grid steps whenever B allows (v7x uses both TensorCores only if
    #    the "parallel" axis has multiple steps; also enables input pipelining)
    #  * <= 1024 rows/step (amortizes ~0.35us grid-step overhead on v6e while
    #    keeping f32 activation slabs inside v5e's 16 MiB default scoped VMEM).
    # v6e-only deployments can pass batch_tile=2048.
    if batch_tile is None:
        batch_tile = min(1024, _round_up(pl.cdiv(B, 2), 8))
    batch_tile = max(8, _round_up(batch_tile, 8))
    B_pad = _round_up(B, batch_tile)
    if B_pad != B:
        x = jnp.pad(x, ((0, B_pad - B), (0, 0)))

    # Pack / fuse twin-Q weights (tiny; constant-folded / hoisted under jit).
    p1, p2 = params["q1"], params["q2"]
    w1 = jnp.concatenate([p1["w1"], p2["w1"]], axis=1).astype(jnp.bfloat16)   # (S+A, 2H)
    b1 = jnp.concatenate([p1["b1"], p2["b1"]], axis=1)                        # (1, 2H) f32
    w2a = p1["w2"].astype(jnp.bfloat16)                                       # (H, H)
    w2b = p2["w2"].astype(jnp.bfloat16)                                       # (H, H)
    b2a, b2b = p1["b2"], p2["b2"]                                             # (1, H) f32
    zcol = jnp.zeros((H, 1), jnp.float32)
    w3a = jnp.concatenate([p1["w3"], zcol], axis=1).astype(jnp.bfloat16)      # (H, 2)
    w3b = jnp.concatenate([zcol, p2["w3"]], axis=1).astype(jnp.bfloat16)      # (H, 2)
    b3 = jnp.concatenate([p1["b3"], p2["b3"]], axis=1)                        # (1, 2) f32

    grid = (B_pad // batch_tile,)
    x_map = lambda i: (i, 0)
    w_map = lambda i: (0, 0)

    # Grid-invariant weights: single-buffer at production sizes to halve their
    # VMEM footprint (matters for H >= 1024 within v7x's 64 MiB VMEM); keep
    # default double-buffering at small H where the saving is negligible.
    if single_buffer_weights is None:
        single_buffer_weights = H >= 512
    if single_buffer_weights:
        w_spec = lambda arr: pl.BlockSpec(arr.shape, w_map,
                                          pipeline_mode=pl.Buffered(1))
    else:
        w_spec = lambda arr: pl.BlockSpec(arr.shape, w_map)

    weight_args = (w1, b1, w2a, b2a, w2b, b2b, w3a, w3b, b3)
    in_specs = ([pl.BlockSpec((batch_tile, in_dim), x_map)]
                + [w_spec(a) for a in weight_args])

    out = pl.pallas_call(
        _critic_kernel,
        out_shape=jax.ShapeDtypeStruct((B_pad, 2), jnp.float32),
        grid_spec=pltpu.PrefetchScalarGridSpec(
            num_scalar_prefetch=0,
            grid=grid,
            in_specs=in_specs,
            out_specs=pl.BlockSpec((batch_tile, 2), x_map),
        ),
        compiler_params=pltpu.CompilerParams(
            dimension_semantics=("parallel",)),
    )(x, *weight_args)

    # Padded rows (if any) hold garbage q-values; slice them off here.
    return out[:B, 0:1], out[:B, 1:2]


def critic_q1(state, action, params, **kw):
    """Pallas equivalent of Critic.q1(state, action)."""
    return critic_forward(state, action, params, **kw)[0]


def init_critic_params(key, state_dim, action_dim, hidden_dim=256):
    """Deterministic init mirroring torch.nn.Linear default (U[-1/sqrt(fan_in), ...])."""
    d_in = state_dim + action_dim

    def linear(key, fan_in, fan_out):
        kw, kb = jax.random.split(key)
        bound = 1.0 / jnp.sqrt(fan_in)
        w = jax.random.uniform(kw, (fan_in, fan_out), jnp.float32, -bound, bound)
        b = jax.random.uniform(kb, (1, fan_out), jnp.float32, -bound, bound)
        return w, b

    keys = jax.random.split(key, 6)

    def q_params(k3):
        w1, b1 = linear(k3[0], d_in, hidden_dim)
        w2, b2 = linear(k3[1], hidden_dim, hidden_dim)
        w3, b3 = linear(k3[2], hidden_dim, 1)
        return {"w1": w1, "b1": b1, "w2": w2, "b2": b2, "w3": w3, "b3": b3}

    return {"q1": q_params(keys[:3]), "q2": q_params(keys[3:])}


def _reference_forward(state, action, params):
    """Pure-JAX reference mirroring the kernel's mixed precision (bf16 MXU, f32 accum)."""
    x = jnp.concatenate([state, action], axis=-1).astype(jnp.float32)

    def mlp(p):
        h = jnp.dot(x.astype(jnp.bfloat16), p["w1"].astype(jnp.bfloat16),
                    preferred_element_type=jnp.float32) + p["b1"]
        h = jnp.maximum(h, 0.0)
        h = jnp.dot(h.astype(jnp.bfloat16), p["w2"].astype(jnp.bfloat16),
                    preferred_element_type=jnp.float32) + p["b2"]
        h = jnp.maximum(h, 0.0)
        return jnp.dot(h.astype(jnp.bfloat16), p["w3"].astype(jnp.bfloat16),
                       preferred_element_type=jnp.float32) + p["b3"]

    return mlp(params["q1"]), mlp(params["q2"])


if __name__ == "__main__":
    key = jax.random.PRNGKey(0)
    k_param, k_state, k_action = jax.random.split(key, 3)

    # Small shapes consistent with the module: batch=8, state_dim=11,
    # action_dim=3, hidden_dim=32.  (Production: H a multiple of 128,
    # batch_tile 512-2048 depending on chip generation.)
    batch, state_dim, action_dim, hidden_dim = 8, 11, 3, 32

    params = init_critic_params(k_param, state_dim, action_dim, hidden_dim)
    state = jax.random.normal(k_state, (batch, state_dim), jnp.float32)
    action = jax.random.normal(k_action, (batch, action_dim), jnp.float32)

    q1, q2 = critic_forward(state, action, params)
    jax.block_until_ready((q1, q2))

    q1_ref, q2_ref = _reference_forward(state, action, params)
    assert q1.shape == (batch, 1) and q2.shape == (batch, 1)
    assert jnp.allclose(q1, q1_ref, atol=2e-3, rtol=2e-3)
    assert jnp.allclose(q2, q2_ref, atol=2e-3, rtol=2e-3)

    # q1-only path exercises the same kernel.
    q1_only = critic_q1(state, action, params)
    jax.block_until_ready(q1_only)
    assert jnp.allclose(q1_only, q1_ref, atol=2e-3, rtol=2e-3)

    print("KERNEL_OK")
</pallas_src>

<mosaic_0001>
module attributes {stable_mosaic.version = 11 : i64} {
  func.func @_critic_kernel(%arg0: i32, %arg1: memref<8x14xf32, #tpu.memory_space<vmem>>, %arg2: memref<14x64xbf16, #tpu.memory_space<vmem>>, %arg3: memref<1x64xf32, #tpu.memory_space<vmem>>, %arg4: memref<32x32xbf16, #tpu.memory_space<vmem>>, %arg5: memref<1x32xf32, #tpu.memory_space<vmem>>, %arg6: memref<32x32xbf16, #tpu.memory_space<vmem>>, %arg7: memref<1x32xf32, #tpu.memory_space<vmem>>, %arg8: memref<32x2xbf16, #tpu.memory_space<vmem>>, %arg9: memref<32x2xbf16, #tpu.memory_space<vmem>>, %arg10: memref<1x2xf32, #tpu.memory_space<vmem>>, %arg11: memref<8x2xf32, #tpu.memory_space<vmem>>) attributes {dimension_semantics = [#tpu.dimension_semantics<parallel>], iteration_bounds = array<i64: 1>, scalar_prefetch = 0 : i64, scratch_operands = 0 : i64, tpu.core_type = #tpu.core_type<tc>, window_params = [{transform_indices = @transform_0, window_bounds = array<i64: 8, 14>}, {pipeline_mode = #tpu.pipeline_mode<synchronous>, transform_indices = @transform_1, window_bounds = array<i64: 14, 64>}, {pipeline_mode = #tpu.pipeline_mode<synchronous>, transform_indices = @transform_2, window_bounds = array<i64: 1, 64>}, {pipeline_mode = #tpu.pipeline_mode<synchronous>, transform_indices = @transform_3, window_bounds = array<i64: 32, 32>}, {pipeline_mode = #tpu.pipeline_mode<synchronous>, transform_indices = @transform_4, window_bounds = array<i64: 1, 32>}, {pipeline_mode = #tpu.pipeline_mode<synchronous>, transform_indices = @transform_5, window_bounds = array<i64: 32, 32>}, {pipeline_mode = #tpu.pipeline_mode<synchronous>, transform_indices = @transform_6, window_bounds = array<i64: 1, 32>}, {pipeline_mode = #tpu.pipeline_mode<synchronous>, transform_indices = @transform_7, window_bounds = array<i64: 32, 2>}, {pipeline_mode = #tpu.pipeline_mode<synchronous>, transform_indices = @transform_8, window_bounds = array<i64: 32, 2>}, {pipeline_mode = #tpu.pipeline_mode<synchronous>, transform_indices = @transform_9, window_bounds = array<i64: 1, 2>}, {transform_indices = @transform_10, window_bounds = array<i64: 8, 2>}]} {
    %c0 = arith.constant 0 : index
    %c0_0 = arith.constant 0 : index
    %0 = vector.load %arg1[%c0, %c0_0] : memref<8x14xf32, #tpu.memory_space<vmem>>, vector<8x14xf32>
    %1 = arith.truncf %0 : vector<8x14xf32> to vector<8x14xbf16>
    %c0_1 = arith.constant 0 : index
    %c0_2 = arith.constant 0 : index
    %2 = vector.load %arg2[%c0_1, %c0_2] : memref<14x64xbf16, #tpu.memory_space<vmem>>, vector<14x64xbf16>
    %cst = arith.constant dense<0.000000e+00> : vector<8x64xf32>
    %3 = tpu.matmul %1, %2, %cst {dimension_numbers = #tpu.dot_dimension_numbers<[1], [0], [0], [1], [0, 0, 1, 1], [], []>} : vector<8x14xbf16>, vector<14x64xbf16>, vector<8x64xf32> -> vector<8x64xf32>
    %c0_3 = arith.constant 0 : index
    %c0_4 = arith.constant 0 : index
    %4 = vector.load %arg3[%c0_3, %c0_4] : memref<1x64xf32, #tpu.memory_space<vmem>>, vector<1x64xf32>
    %5 = vector.broadcast %4 : vector<1x64xf32> to vector<8x64xf32>
    %6 = arith.addf %3, %5 : vector<8x64xf32>
    %cst_5 = arith.constant 0.000000e+00 : f32
    %7 = vector.broadcast %cst_5 : f32 to vector<8x64xf32>
    %8 = arith.maximumf %6, %7 : vector<8x64xf32>
    %9 = vector.extract_strided_slice %8 {offsets = [0, 0], sizes = [8, 32], strides = [1, 1]} : vector<8x64xf32> to vector<8x32xf32>
    %10 = arith.truncf %9 : vector<8x32xf32> to vector<8x32xbf16>
    %11 = vector.extract_strided_slice %8 {offsets = [0, 32], sizes = [8, 32], strides = [1, 1]} : vector<8x64xf32> to vector<8x32xf32>
    %12 = arith.truncf %11 : vector<8x32xf32> to vector<8x32xbf16>
    %c0_6 = arith.constant 0 : index
    %c0_7 = arith.constant 0 : index
    %13 = vector.load %arg4[%c0_6, %c0_7] : memref<32x32xbf16, #tpu.memory_space<vmem>>, vector<32x32xbf16>
    %cst_8 = arith.constant dense<0.000000e+00> : vector<8x32xf32>
    %14 = tpu.matmul %10, %13, %cst_8 {dimension_numbers = #tpu.dot_dimension_numbers<[1], [0], [0], [1], [0, 0, 1, 1], [], []>} : vector<8x32xbf16>, vector<32x32xbf16>, vector<8x32xf32> -> vector<8x32xf32>
    %c0_9 = arith.constant 0 : index
    %c0_10 = arith.constant 0 : index
    %15 = vector.load %arg5[%c0_9, %c0_10] : memref<1x32xf32, #tpu.memory_space<vmem>>, vector<1x32xf32>
    %16 = vector.broadcast %15 : vector<1x32xf32> to vector<8x32xf32>
    %17 = arith.addf %14, %16 : vector<8x32xf32>
    %cst_11 = arith.constant 0.000000e+00 : f32
    %18 = vector.broadcast %cst_11 : f32 to vector<8x32xf32>
    %19 = arith.maximumf %17, %18 : vector<8x32xf32>
    %c0_12 = arith.constant 0 : index
    %c0_13 = arith.constant 0 : index
    %20 = vector.load %arg6[%c0_12, %c0_13] : memref<32x32xbf16, #tpu.memory_space<vmem>>, vector<32x32xbf16>
    %cst_14 = arith.constant dense<0.000000e+00> : vector<8x32xf32>
    %21 = tpu.matmul %12, %20, %cst_14 {dimension_numbers = #tpu.dot_dimension_numbers<[1], [0], [0], [1], [0, 0, 1, 1], [], []>} : vector<8x32xbf16>, vector<32x32xbf16>, vector<8x32xf32> -> vector<8x32xf32>
    %c0_15 = arith.constant 0 : index
    %c0_16 = arith.constant 0 : index
    %22 = vector.load %arg7[%c0_15, %c0_16] : memref<1x32xf32, #tpu.memory_space<vmem>>, vector<1x32xf32>
    %23 = vector.broadcast %22 : vector<1x32xf32> to vector<8x32xf32>
    %24 = arith.addf %21, %23 : vector<8x32xf32>
    %cst_17 = arith.constant 0.000000e+00 : f32
    %25 = vector.broadcast %cst_17 : f32 to vector<8x32xf32>
    %26 = arith.maximumf %24, %25 : vector<8x32xf32>
    %27 = arith.truncf %19 : vector<8x32xf32> to vector<8x32xbf16>
    %c0_18 = arith.constant 0 : index
    %c0_19 = arith.constant 0 : index
    %28 = vector.load %arg8[%c0_18, %c0_19] : memref<32x2xbf16, #tpu.memory_space<vmem>>, vector<32x2xbf16>
    %cst_20 = arith.constant dense<0.000000e+00> : vector<8x2xf32>
    %29 = tpu.matmul %27, %28, %cst_20 {dimension_numbers = #tpu.dot_dimension_numbers<[1], [0], [0], [1], [0, 0, 1, 1], [], []>} : vector<8x32xbf16>, vector<32x2xbf16>, vector<8x2xf32> -> vector<8x2xf32>
    %30 = arith.truncf %26 : vector<8x32xf32> to vector<8x32xbf16>
    %c0_21 = arith.constant 0 : index
    %c0_22 = arith.constant 0 : index
    %31 = vector.load %arg9[%c0_21, %c0_22] : memref<32x2xbf16, #tpu.memory_space<vmem>>, vector<32x2xbf16>
    %cst_23 = arith.constant dense<0.000000e+00> : vector<8x2xf32>
    %32 = tpu.matmul %30, %31, %cst_23 {dimension_numbers = #tpu.dot_dimension_numbers<[1], [0], [0], [1], [0, 0, 1, 1], [], []>} : vector<8x32xbf16>, vector<32x2xbf16>, vector<8x2xf32> -> vector<8x2xf32>
    %33 = arith.addf %29, %32 : vector<8x2xf32>
    %c0_24 = arith.constant 0 : index
    %c0_25 = arith.constant 0 : index
    %34 = vector.load %arg10[%c0_24, %c0_25] : memref<1x2xf32, #tpu.memory_space<vmem>>, vector<1x2xf32>
    %35 = vector.broadcast %34 : vector<1x2xf32> to vector<8x2xf32>
    %36 = arith.addf %33, %35 : vector<8x2xf32>
    %c0_26 = arith.constant 0 : index
    %c0_27 = arith.constant 0 : index
    %37 = vector.load %arg11[%c0_26, %c0_27] : memref<8x2xf32, #tpu.memory_space<vmem>>, vector<8x2xf32>
    tpu.vector_store %arg11[%c0_26, %c0_27], %36 {strides = array<i32>} : memref<8x2xf32, #tpu.memory_space<vmem>>, vector<8x2xf32>,
    return
  }
  func.func @transform_0(%arg0: i32) -> (i32, i32) {
    %c0_i32 = arith.constant 0 : i32
    %c0_i32_0 = arith.constant 0 : i32
    return %arg0, %c0_i32 : i32, i32
  }
  func.func @transform_1(%arg0: i32) -> (i32, i32) {
    %c0_i32 = arith.constant 0 : i32
    %c0_i32_0 = arith.constant 0 : i32
    %c0_i32_1 = arith.constant 0 : i32
    return %c0_i32, %c0_i32_0 : i32, i32
  }
  func.func @transform_2(%arg0: i32) -> (i32, i32) {
    %c0_i32 = arith.constant 0 : i32
    %c0_i32_0 = arith.constant 0 : i32
    %c0_i32_1 = arith.constant 0 : i32
    return %c0_i32, %c0_i32_0 : i32, i32
  }
  func.func @transform_3(%arg0: i32) -> (i32, i32) {
    %c0_i32 = arith.constant 0 : i32
    %c0_i32_0 = arith.constant 0 : i32
    %c0_i32_1 = arith.constant 0 : i32
    return %c0_i32, %c0_i32_0 : i32, i32
  }
  func.func @transform_4(%arg0: i32) -> (i32, i32) {
    %c0_i32 = arith.constant 0 : i32
    %c0_i32_0 = arith.constant 0 : i32
    %c0_i32_1 = arith.constant 0 : i32
    return %c0_i32, %c0_i32_0 : i32, i32
  }
  func.func @transform_5(%arg0: i32) -> (i32, i32) {
    %c0_i32 = arith.constant 0 : i32
    %c0_i32_0 = arith.constant 0 : i32
    %c0_i32_1 = arith.constant 0 : i32
    return %c0_i32, %c0_i32_0 : i32, i32
  }
  func.func @transform_6(%arg0: i32) -> (i32, i32) {
    %c0_i32 = arith.constant 0 : i32
    %c0_i32_0 = arith.constant 0 : i32
    %c0_i32_1 = arith.constant 0 : i32
    return %c0_i32, %c0_i32_0 : i32, i32
  }
  func.func @transform_7(%arg0: i32) -> (i32, i32) {
    %c0_i32 = arith.constant 0 : i32
    %c0_i32_0 = arith.constant 0 : i32
    %c0_i32_1 = arith.constant 0 : i32
    return %c0_i32, %c0_i32_0 : i32, i32
  }
  func.func @transform_8(%arg0: i32) -> (i32, i32) {
    %c0_i32 = arith.constant 0 : i32
    %c0_i32_0 = arith.constant 0 : i32
    %c0_i32_1 = arith.constant 0 : i32
    return %c0_i32, %c0_i32_0 : i32, i32
  }
  func.func @transform_9(%arg0: i32) -> (i32, i32) {
    %c0_i32 = arith.constant 0 : i32
    %c0_i32_0 = arith.constant 0 : i32
    %c0_i32_1 = arith.constant 0 : i32
    return %c0_i32, %c0_i32_0 : i32, i32
  }
  func.func @transform_10(%arg0: i32) -> (i32, i32) {
    %c0_i32 = arith.constant 0 : i32
    %c0_i32_0 = arith.constant 0 : i32
    return %arg0, %c0_i32 : i32, i32
  }
}

</mosaic_0001>

<llo_original>
// kernel: tpu_custom_call.1
$region0: #{tpu_custom_call.1}
  #allocation0 [shape = 'u32[]', space=smem, size = 0x4, offset = 0x4, fixed_abs, tag = 'smem constant byte address 0x4 - core index']
  #allocation1 [shape = 'u32[144,128]{1,0:T(1,128)}', space=vmem, size = 0x12000, scoped, tag = 'internal scratch']
  %s0 = inlined_call_operand.hbm [shape: f32[8,14], index: 0, kind: input, shape index: {}]
  %s1 = inlined_call_operand.hbm [shape: bf16[14,64], index: 1, kind: input, shape index: {}]
  %s2 = inlined_call_operand.vmem [shape: f32[1,64], index: 2, kind: input, shape index: {}]
  %s3 = inlined_call_operand.vmem [shape: bf16[32,32], index: 3, kind: input, shape index: {}]
  %s4 = inlined_call_operand.vmem [shape: f32[1,32], index: 4, kind: input, shape index: {}]
  %s5 = inlined_call_operand.vmem [shape: bf16[32,32], index: 5, kind: input, shape index: {}]
  %s6 = inlined_call_operand.vmem [shape: f32[1,32], index: 6, kind: input, shape index: {}]
  %s7 = inlined_call_operand.vmem [shape: bf16[32,2], index: 7, kind: input, shape index: {}]
  %s8 = inlined_call_operand.vmem [shape: bf16[32,2], index: 8, kind: input, shape index: {}]
  %s9 = inlined_call_operand.vmem [shape: f32[1,2], index: 9, kind: input, shape index: {}]
  %s10 = inlined_call_operand.vmem [shape: f32[8,2], index: 10, kind: output, shape index: {}]
  %s11 = sld [smem:[#allocation0]]
  $region58: #{tpu_custom_call.1} parent=0
    _
  %s13 = ssub.s32 1, %s11
  %s14 = scalar_select 0, %s13, %s11
  $region1: #{tpu_custom_call.1} parent=0
    #allocation2 [shape = 'u8[4096]{0}', space=vmem, size = 0x1000, scoped, tag = 'input window, operand 0, single buffered']
    #allocation3 [shape = 's32[1]{0}', space=sflag, size = 0x4, scoped, tag = 'scoped memory for tpu_custom_call.1']
    #allocation4 [shape = 'u8[4096]{0}', space=vmem, size = 0x1000, scoped, tag = 'input window, operand 1, single buffered']
    #allocation5 [shape = 's32[1]{0}', space=sflag, size = 0x4, scoped, tag = 'scoped memory for tpu_custom_call.1']
    %15 = vsyncpa [#allocation3], 0
    %16 = vsyncpa [#allocation5], 0
    // Predicated region
    $region2: #{tpu_custom_call.1} parent=1 // pred_check
      _
    $region3: #{tpu_custom_call.1} parent=1 // pred_check_branch
      %18 = sbr.rel (0) target = $region5
    $region4: #{tpu_custom_call.1} parent=1 // pred_region
      %s20 = ssub.s32 128, 128
      %21 = vsyncadd [#allocation3], %s20
      %s23 = sshll.u32 [#allocation2], 4
      %s24 = int_to_ptr.vmem [resolvable:$true] %s23
      %26 = dma.hbm_to_vmem [thread:$0]  %s0, 128, %s24, [#allocation3]
    $region5: #{tpu_custom_call.1} parent=1 // pred_fallthru
      _
    // Predicated region
    $region6: #{tpu_custom_call.1} parent=1 // pred_check
      _
    $region7: #{tpu_custom_call.1} parent=1 // pred_check_branch
      %28 = sbr.rel (0) target = $region9
    $region8: #{tpu_custom_call.1} parent=1 // pred_region
      %s30 = ssub.s32 128, 128
      %31 = vsyncadd [#allocation5], %s30
      %s32 = sshll.u32 [#allocation4], 4
      %s33 = int_to_ptr.vmem [resolvable:$true] %s32
      %38 = dma.hbm_to_vmem [thread:$0]  %s1, 128, %s33, [#allocation5], 64, 64, 4
    $region9: #{tpu_custom_call.1} parent=1 // pred_fallthru
      _
    // Predicated region
    $region10: #{tpu_custom_call.1} parent=1 // pred_check
      _
    $region11: #{tpu_custom_call.1} parent=1 // pred_check_branch
      %40 = sbr.rel (0) target = $region13
    $region12: #{tpu_custom_call.1} parent=1 // pred_region
      _
    $region13: #{tpu_custom_call.1} parent=1 // pred_fallthru
      _
    // Predicated region
    $region14: #{tpu_custom_call.1} parent=1 // pred_check
      _
    $region15: #{tpu_custom_call.1} parent=1 // pred_check_branch
      %42 = sbr.rel (0) target = $region17
    $region16: #{tpu_custom_call.1} parent=1 // pred_region
      _
    $region17: #{tpu_custom_call.1} parent=1 // pred_fallthru
      _
    // Predicated region
    $region18: #{tpu_custom_call.1} parent=1 // pred_check
      _
    $region19: #{tpu_custom_call.1} parent=1 // pred_check_branch
      %44 = sbr.rel (0) target = $region21
    $region20: #{tpu_custom_call.1} parent=1 // pred_region
      _
    $region21: #{tpu_custom_call.1} parent=1 // pred_fallthru
      _
    // Predicated region
    $region22: #{tpu_custom_call.1} parent=1 // pred_check
      _
    $region23: #{tpu_custom_call.1} parent=1 // pred_check_branch
      %46 = sbr.rel (0) target = $region25
    $region24: #{tpu_custom_call.1} parent=1 // pred_region
      _
    $region25: #{tpu_custom_call.1} parent=1 // pred_fallthru
      _
    // Predicated region
    $region26: #{tpu_custom_call.1} parent=1 // pred_check
      _
    $region27: #{tpu_custom_call.1} parent=1 // pred_check_branch
      %48 = sbr.rel (0) target = $region29
    $region28: #{tpu_custom_call.1} parent=1 // pred_region
      _
    $region29: #{tpu_custom_call.1} parent=1 // pred_fallthru
      _
    // Predicated region
    $region30: #{tpu_custom_call.1} parent=1 // pred_check
      _
    $region31: #{tpu_custom_call.1} parent=1 // pred_check_branch
      %50 = sbr.rel (0) target = $region33
    $region32: #{tpu_custom_call.1} parent=1 // pred_region
      _
    $region33: #{tpu_custom_call.1} parent=1 // pred_fallthru
      _
    // Predicated region
    $region34: #{tpu_custom_call.1} parent=1 // pred_check
      _
    $region35: #{tpu_custom_call.1} parent=1 // pred_check_branch
      %52 = sbr.rel (0) target = $region37
    $region36: #{tpu_custom_call.1} parent=1 // pred_region
      _
    $region37: #{tpu_custom_call.1} parent=1 // pred_fallthru
      _
    // Predicated region
    $region38: #{tpu_custom_call.1} parent=1 // pred_check
      _
    $region39: #{tpu_custom_call.1} parent=1 // pred_check_branch
      %54 = sbr.rel (0) target = $region41
    $region40: #{tpu_custom_call.1} parent=1 // pred_region
      _
    $region41: #{tpu_custom_call.1} parent=1 // pred_fallthru
      _
    // Predicated region
    $region42: #{tpu_custom_call.1} parent=1 // pred_check
      _
    $region43: #{tpu_custom_call.1} parent=1 // pred_check_branch
      %56 = sbr.rel (0) target = $region45
    $region44: #{tpu_custom_call.1} parent=1 // pred_region
      %57 = dma.done [#allocation3], 128
    $region45: #{tpu_custom_call.1} parent=1 // pred_fallthru
      _
    // Predicated region
    $region46: #{tpu_custom_call.1} parent=1 // pred_check
      _
    $region47: #{tpu_custom_call.1} parent=1 // pred_check_branch
      %59 = sbr.rel (0) target = $region49
    $region48: #{tpu_custom_call.1} parent=1 // pred_region
      %60 = dma.done [#allocation5], 128
    $region49: #{tpu_custom_call.1} parent=1 // pred_fallthru
      _
    %v62 = vld [vmem:[#allocation2] sm:$0xff]
    %v63 = vpack.c.bf16 %v62, %v62
    %v64 = vld [vmem:[#allocation4] sm:$0xf]
    %v65 = vld [vmem:[#allocation4 + $0x4] sm:$0x7]
    %v66 = vld [vmem:[%s2] sm:$0x1]
    %v68 = vlaneseq
    %v69 = vshrl.u32 %v68, 7
    %v70 = vsub.s32 0, %v69
    %v71 = vrot.slane %v66, %v70
    %v75 = vunpack.c.l.b16 %v64
    %v76 = vunpack.c.l.b16 %v65
    %v77 = vpack.c.b16 %v76, %v75
    %vm78 = vcmask 113664
    %v80 = vsel %vm78, %v63, 0
    %vm82 = vcmask 1046528
    %v84 = vsel %vm82, %v77, 0
    %86 = vmatprep.subr.bf16.mxu0 0
    %87 = vmatpush1.bf16.msra.mxu0 0
    %88 = vmatprep.subr.bf16.mxu0 0
    %89 = vmatpush1.bf16.msra.mxu0 0
    %90 = vmatprep.subr.bf16.mxu0 0
    %91 = vmatpush1.bf16.msra.mxu0 0
    %92 = vmatprep.subr.bf16.mxu0 0
    %93 = vmatpush1.bf16.msra.mxu0 0
    %94 = vmatprep.subr.bf16.mxu0 0
    %95 = vmatpush1.bf16.msra.mxu0 0
    %96 = vmatprep.subr.bf16.mxu0 0
    %97 = vmatpush1.bf16.msra.mxu0 0
    %98 = vmatprep.subr.bf16.mxu0 0
    %99 = vmatpush1.bf16.msra.mxu0 0
    %100 = vmatprep.subr.bf16.mxu0 0
    %101 = vmatpush1.bf16.msra.mxu0 %v84
    %102 = vmatprep.subr.bf16.mxu0 0
    %103 = vmatpush2.bf16.msra.mxu0 0
    %104 = vmatprep.subr.bf16.mxu0 0
    %105 = vmatpush2.bf16.msra.mxu0 0
    %106 = vmatprep.subr.bf16.mxu0 0
    %107 = vmatpush2.bf16.msra.mxu0 0
    %108 = vmatprep.subr.bf16.mxu0 0
    %109 = vmatpush2.bf16.msra.mxu0 0
    %110 = vmatprep.subr.bf16.mxu0 0
    %111 = vmatpush2.bf16.msra.mxu0 0
    %112 = vmatprep.subr.bf16.mxu0 0
    %113 = vmatpush2.bf16.msra.mxu0 0
    %114 = vmatprep.subr.bf16.mxu0 0
    %115 = vmatpush2.bf16.msra.mxu0 0
    %116 = vmatprep.subr.bf16.mxu0 0
    %117 = vmatpush2.bf16.msra.mxu0 0
    %118 = vmatprep.mubr.bf16.mxu0 0
    %119 = vmatmul.mubr.bf16.gmra.mxu0 %v80
    %v120 = vpop.f32.mrf.mxu0
    %v121 = vadd.f32 %v71, %v120
    %v122 = vpop.f32.mrf.mxu0
    %v123 = vpop.f32.mrf.mxu0
    %v124 = vpop.f32.mrf.mxu0
    %125 = vdwg.mxu0
    %v126 = vmax.f32 %v121, 0.0
    %v127 = vpack.c.bf16 %v126, %v126
    %v128 = vld [vmem:[%s3] sm:$0xf]
    %v129 = vld [vmem:[%s3 + $0x4] sm:$0xf]
    %v130 = vld [vmem:[%s3 + $0x8] sm:$0xf]
    %v131 = vld [vmem:[%s3 + $0xc] sm:$0xf]
    %v132 = vld [vmem:[%s4] sm:$0x1]
    %v134 = vlaneseq
    %v135 = vshrl.u32 %v134, 7
    %v136 = vsub.s32 0, %v135
    %v137 = vrot.slane %v132, %v136
    %v143 = vunpack.c.l.b16 %v128
    %v144 = vunpack.c.l.b16 %v129
    %v145 = vunpack.c.l.b16 %v130
    %v146 = vunpack.c.l.b16 %v131
    %v147 = vpack.c.b16 %v144, %v143
    %v148 = vpack.c.b16 %v146, %v145
    %vm151 = vcmask 261120
    %v153 = vsel %vm151, %v127, 0
    %155 = vmatprep.subr.bf16.mxu0 0
    %156 = vmatpush1.bf16.msra.mxu0 0
    %157 = vmatprep.subr.bf16.mxu0 0
    %158 = vmatpush1.bf16.msra.mxu0 0
    %159 = vmatprep.subr.bf16.mxu0 0
    %160 = vmatpush1.bf16.msra.mxu0 0
    %161 = vmatprep.subr.bf16.mxu0 0
    %162 = vmatpush1.bf16.msra.mxu0 0
    %163 = vmatprep.subr.bf16.mxu0 0
    %164 = vmatpush1.bf16.msra.mxu0 0
    %165 = vmatprep.subr.bf16.mxu0 0
    %166 = vmatpush1.bf16.msra.mxu0 0
    %167 = vmatprep.subr.bf16.mxu0 0
    %168 = vmatpush1.bf16.msra.mxu0 %v148
    %169 = vmatprep.subr.bf16.mxu0 0
    %170 = vmatpush1.bf16.msra.mxu0 %v147
    %171 = vmatprep.subr.bf16.mxu0 0
    %172 = vmatpush2.bf16.msra.mxu0 0
    %173 = vmatprep.subr.bf16.mxu0 0
    %174 = vmatpush2.bf16.msra.mxu0 0
    %175 = vmatprep.subr.bf16.mxu0 0
    %176 = vmatpush2.bf16.msra.mxu0 0
    %177 = vmatprep.subr.bf16.mxu0 0
    %178 = vmatpush2.bf16.msra.mxu0 0
    %179 = vmatprep.subr.bf16.mxu0 0
    %180 = vmatpush2.bf16.msra.mxu0 0
    %181 = vmatprep.subr.bf16.mxu0 0
    %182 = vmatpush2.bf16.msra.mxu0 0
    %183 = vmatprep.subr.bf16.mxu0 0
    %184 = vmatpush2.bf16.msra.mxu0 0
    %185 = vmatprep.subr.bf16.mxu0 0
    %186 = vmatpush2.bf16.msra.mxu0 0
    %187 = vmatprep.mubr.bf16.mxu0 0
    %188 = vmatmul.mubr.bf16.gmra.mxu0 %v153
    %v189 = vpop.f32.mrf.mxu0
    %v190 = vadd.f32 %v137, %v189
    %v191 = vpop.f32.mrf.mxu0
    %v192 = vpop.f32.mrf.mxu0
    %v193 = vpop.f32.mrf.mxu0
    %194 = vdwg.mxu0
    %v195 = vmax.f32 %v190, 0.0
    %v196 = vld [vmem:[%s5] sm:$0xf]
    %v197 = vld [vmem:[%s5 + $0x4] sm:$0xf]
    %v198 = vld [vmem:[%s5 + $0x8] sm:$0xf]
    %v199 = vld [vmem:[%s5 + $0xc] sm:$0xf]
    %v200 = vld [vmem:[%s6] sm:$0x1]
    %v202 = vlaneseq
    %v203 = vshrl.u32 %v202, 7
    %v204 = vsub.s32 0, %v203
    %v205 = vrot.slane %v200, %v204
    %208 = vrot.lane.b32.xlu0 %v127, 96
    %v209 = vpop.permute.xlu0 %208
    %v214 = vunpack.c.l.b16 %v196
    %v215 = vunpack.c.l.b16 %v197
    %v216 = vunpack.c.l.b16 %v198
    %v217 = vunpack.c.l.b16 %v199
    %v218 = vpack.c.b16 %v215, %v214
    %v219 = vpack.c.b16 %v217, %v216
    %v223 = vsel %vm151, %v209, 0
    %225 = vmatprep.subr.bf16.mxu0 0
    %226 = vmatpush1.bf16.msra.mxu0 0
    %227 = vmatprep.subr.bf16.mxu0 0
    %228 = vmatpush1.bf16.msra.mxu0 0
    %229 = vmatprep.subr.bf16.mxu0 0
    %230 = vmatpush1.bf16.msra.mxu0 0
    %231 = vmatprep.subr.bf16.mxu0 0
    %232 = vmatpush1.bf16.msra.mxu0 0
    %233 = vmatprep.subr.bf16.mxu0 0
    %234 = vmatpush1.bf16.msra.mxu0 0
    %235 = vmatprep.subr.bf16.mxu0 0
    %236 = vmatpush1.bf16.msra.mxu0 0
    %237 = vmatprep.subr.bf16.mxu0 0
    %238 = vmatpush1.bf16.msra.mxu0 %v219
    %239 = vmatprep.subr.bf16.mxu0 0
    %240 = vmatpush1.bf16.msra.mxu0 %v218
    %241 = vmatprep.subr.bf16.mxu0 0
    %242 = vmatpush2.bf16.msra.mxu0 0
    %243 = vmatprep.subr.bf16.mxu0 0
    %244 = vmatpush2.bf16.msra.mxu0 0
    %245 = vmatprep.subr.bf16.mxu0 0
    %246 = vmatpush2.bf16.msra.mxu0 0
    %247 = vmatprep.subr.bf16.mxu0 0
    %248 = vmatpush2.bf16.msra.mxu0 0
    %249 = vmatprep.subr.bf16.mxu0 0
    %250 = vmatpush2.bf16.msra.mxu0 0
    %251 = vmatprep.subr.bf16.mxu0 0
    %252 = vmatpush2.bf16.msra.mxu0 0
    %253 = vmatprep.subr.bf16.mxu0 0
    %254 = vmatpush2.bf16.msra.mxu0 0
    %255 = vmatprep.subr.bf16.mxu0 0
    %256 = vmatpush2.bf16.msra.mxu0 0
    %257 = vmatprep.mubr.bf16.mxu0 0
    %258 = vmatmul.mubr.bf16.gmra.mxu0 %v223
    %v259 = vpop.f32.mrf.mxu0
    %v260 = vadd.f32 %v205, %v259
    %v261 = vpop.f32.mrf.mxu0
    %v262 = vpop.f32.mrf.mxu0
    %v263 = vpop.f32.mrf.mxu0
    %264 = vdwg.mxu0
    %v265 = vmax.f32 %v260, 0.0
    %v266 = vpack.c.bf16 %v195, %v195
    %v267 = vld [vmem:[%s7] sm:$0xf]
    %v268 = vld [vmem:[%s7 + $0x4] sm:$0xf]
    %v269 = vld [vmem:[%s7 + $0x8] sm:$0xf]
    %v270 = vld [vmem:[%s7 + $0xc] sm:$0xf]
    %v271 = vpack.c.bf16 %v265, %v265
    %v272 = vld [vmem:[%s8] sm:$0xf]
    %v273 = vld [vmem:[%s8 + $0x4] sm:$0xf]
    %v274 = vld [vmem:[%s8 + $0x8] sm:$0xf]
    %v275 = vld [vmem:[%s8 + $0xc] sm:$0xf]
    %v280 = vunpack.c.l.b16 %v272
    %v281 = vunpack.c.l.b16 %v273
    %v282 = vunpack.c.l.b16 %v274
    %v283 = vunpack.c.l.b16 %v275
    %v284 = vpack.c.b16 %v281, %v280
    %v285 = vpack.c.b16 %v283, %v282
    %v289 = vsel %vm151, %v271, 0
    %291 = vmatprep.subr.bf16.mxu0 0
    %292 = vmatpush1.bf16.msra.mxu0 0
    %293 = vmatprep.subr.bf16.mxu0 0
    %294 = vmatpush1.bf16.msra.mxu0 0
    %295 = vmatprep.subr.bf16.mxu0 0
    %296 = vmatpush1.bf16.msra.mxu0 0
    %297 = vmatprep.subr.bf16.mxu0 0
    %298 = vmatpush1.bf16.msra.mxu0 0
    %299 = vmatprep.subr.bf16.mxu0 0
    %300 = vmatpush1.bf16.msra.mxu0 0
    %301 = vmatprep.subr.bf16.mxu0 0
    %302 = vmatpush1.bf16.msra.mxu0 0
    %303 = vmatprep.subr.bf16.mxu0 0
    %304 = vmatpush1.bf16.msra.mxu0 %v285
    %305 = vmatprep.subr.bf16.mxu0 0
    %306 = vmatpush1.bf16.msra.mxu0 %v284
    %307 = vmatprep.subr.bf16.mxu0 0
    %308 = vmatpush2.bf16.msra.mxu0 0
    %309 = vmatprep.subr.bf16.mxu0 0
    %310 = vmatpush2.bf16.msra.mxu0 0
    %311 = vmatprep.subr.bf16.mxu0 0
    %312 = vmatpush2.bf16.msra.mxu0 0
    %313 = vmatprep.subr.bf16.mxu0 0
    %314 = vmatpush2.bf16.msra.mxu0 0
    %315 = vmatprep.subr.bf16.mxu0 0
    %316 = vmatpush2.bf16.msra.mxu0 0
    %317 = vmatprep.subr.bf16.mxu0 0
    %318 = vmatpush2.bf16.msra.mxu0 0
    %319 = vmatprep.subr.bf16.mxu0 0
    %320 = vmatpush2.bf16.msra.mxu0 0
    %321 = vmatprep.subr.bf16.mxu0 0
    %322 = vmatpush2.bf16.msra.mxu0 0
    %323 = vmatprep.mubr.bf16.mxu0 0
    %324 = vmatmul.mubr.bf16.gmra.mxu0 %v289
    %v325 = vpop.f32.mrf.mxu0
    %v326 = vadd.f32 0.0, %v325
    %v327 = vpop.f32.mrf.mxu0
    %v328 = vpop.f32.mrf.mxu0
    %v329 = vpop.f32.mrf.mxu0
    %330 = vdwg.mxu0
    %v335 = vunpack.c.l.b16 %v267
    %v336 = vunpack.c.l.b16 %v268
    %v337 = vunpack.c.l.b16 %v269
    %v338 = vunpack.c.l.b16 %v270
    %v339 = vpack.c.b16 %v336, %v335
    %v340 = vpack.c.b16 %v338, %v337
    %v344 = vsel %vm151, %v266, 0
    %346 = vmatprep.subr.bf16.mxu0 0
    %347 = vmatpush1.bf16.msra.mxu0 0
    %348 = vmatprep.subr.bf16.mxu0 0
    %349 = vmatpush1.bf16.msra.mxu0 0
    %350 = vmatprep.subr.bf16.mxu0 0
    %351 = vmatpush1.bf16.msra.mxu0 0
    %352 = vmatprep.subr.bf16.mxu0 0
    %353 = vmatpush1.bf16.msra.mxu0 0
    %354 = vmatprep.subr.bf16.mxu0 0
    %355 = vmatpush1.bf16.msra.mxu0 0
    %356 = vmatprep.subr.bf16.mxu0 0
    %357 = vmatpush1.bf16.msra.mxu0 0
    %358 = vmatprep.subr.bf16.mxu0 0
    %359 = vmatpush1.bf16.msra.mxu0 %v340
    %360 = vmatprep.subr.bf16.mxu0 0
    %361 = vmatpush1.bf16.msra.mxu0 %v339
    %362 = vmatprep.subr.bf16.mxu0 0
    %363 = vmatpush2.bf16.msra.mxu0 0
    %364 = vmatprep.subr.bf16.mxu0 0
    %365 = vmatpush2.bf16.msra.mxu0 0
    %366 = vmatprep.subr.bf16.mxu0 0
    %367 = vmatpush2.bf16.msra.mxu0 0
    %368 = vmatprep.subr.bf16.mxu0 0
    %369 = vmatpush2.bf16.msra.mxu0 0
    %370 = vmatprep.subr.bf16.mxu0 0
    %371 = vmatpush2.bf16.msra.mxu0 0
    %372 = vmatprep.subr.bf16.mxu0 0
    %373 = vmatpush2.bf16.msra.mxu0 0
    %374 = vmatprep.subr.bf16.mxu0 0
    %375 = vmatpush2.bf16.msra.mxu0 0
    %376 = vmatprep.subr.bf16.mxu0 0
    %377 = vmatpush2.bf16.msra.mxu0 0
    %378 = vmatprep.mubr.bf16.mxu0 0
    %379 = vmatmul.mubr.bf16.gmra.mxu0 %v344
    %v380 = vpop.f32.mrf.mxu0
    %v381 = vadd.f32 %v326, %v380
    %v382 = vpop.f32.mrf.mxu0
    %v383 = vpop.f32.mrf.mxu0
    %v384 = vpop.f32.mrf.mxu0
    %385 = vdwg.mxu0
    %v386 = vld [vmem:[%s9] sm:$0x1]
    %v388 = vlaneseq
    %v389 = vshrl.u32 %v388, 7
    %v390 = vsub.s32 0, %v389
    %v391 = vrot.slane %v386, %v390
    %v393 = vadd.f32 %v381, %v391
    %vm394 = vcmask 15360
    %395 = vst.msk [vmem:[%s10] sm:$0xff] %vm394, %v393
    // Predicated region
    $region50: #{tpu_custom_call.1} parent=1 // pred_check
      _
    $region51: #{tpu_custom_call.1} parent=1 // pred_check_branch
      %397 = sbr.rel (0) target = $region53
    $region52: #{tpu_custom_call.1} parent=1 // pred_region
      _
    $region53: #{tpu_custom_call.1} parent=1 // pred_fallthru
      _
    // Predicated region
    $region54: #{tpu_custom_call.1} parent=1 // pred_check
      _
    $region55: #{tpu_custom_call.1} parent=1 // pred_check_branch
      %399 = sbr.rel (0) target = $region57
    $region56: #{tpu_custom_call.1} parent=1 // pred_region
      _
    $region57: #{tpu_custom_call.1} parent=1 // pred_fallthru
      _
    %400 = vsyncpa [#allocation3], 1
    %401 = vsyncpa [#allocation5], 1

</llo_original>
